<compile_context>
chip_gen: v5e
topology: v5e:2x2
jax: 0.10.0
libtpu: 0.0.40
codegen_flags: <defaults>
</compile_context>

<pallas_src>
import jax
import jax.numpy as jnp
from jax.experimental import pallas as pl
from jax.experimental.pallas import tpu as pltpu


def se_scale_kernel(x_ref, w1_ref, b1_ref, w2_ref, b2_ref, o_ref):
    """One batch tile: (TB, C) -> (TB, C) gate."""
    x = x_ref[...]

    # fc1: (TB, C) @ (C, R) + (1, R), ReLU.  MXU accumulates in f32; all
    # elementwise math stays f32 regardless of the streaming dtype.
    h = jnp.dot(x, w1_ref[...], preferred_element_type=jnp.float32)
    h = jnp.maximum(h + b1_ref[...], 0.0)

    # fc2: (TB, R) @ (R, C) + (1, C).
    y = jnp.dot(h, w2_ref[...], preferred_element_type=jnp.float32)
    y = y + b2_ref[...]

    # sigmoid(y) = 0.5 * tanh(0.5 * y) + 0.5 : exact, one EUP push per element.
    gate = 0.5 * jnp.tanh(0.5 * y) + 0.5
    o_ref[...] = gate.astype(o_ref.dtype)


def _vmem_capacity_bytes():
    """Per-core VMEM capacity, with a conservative (v7x-sized) fallback."""
    try:
        return int(pltpu.get_tpu_info().vmem_capacity_bytes)
    except Exception:
        return 64 << 20  # v7x per-TensorCore VMEM (smallest across generations)


def _choose_batch_tile(B, C, itemsize, vmem_cap, weight_bytes):
    """Pick batch-tile rows for the (tb, C) x / gate streams."""
    # VMEM budget for the double-buffered x/out streams: stay well inside the
    # per-generation capacity, leaving room for the resident weights (x2
    # pipeline buffers), semaphores and compiler scratch.
    stream_budget = max(int(vmem_cap * 0.40) - 2 * weight_bytes, 1 << 20)
    tb_vmem = stream_budget // (4 * C * itemsize)  # 2 streams x 2 buffers
    # ~2 MiB per tile amortizes the ~0.35 us per-grid-step overhead
    # (measured ~85% of HBM roofline at 512+-row f32 tiles).
    tb_target = max(8, (2 << 20) // (C * itemsize))
    tb = max(8, min(tb_vmem, tb_target, 1024))
    # Megacore (v7x): prefer >= ~8 grid steps (>= ~4 per core) so each core's
    # pipeline stays full, but never at the price of dropping below ~1 MiB.
    tb_8steps = pl.cdiv(B, 8)
    if tb_8steps * C * itemsize >= (1 << 20):
        tb = min(tb, max(8, tb_8steps))
    tb = min(tb, B)
    if B >= 8:
        tb = max(8, (tb // 8) * 8)  # sublane-align
    return max(1, tb)


def se_scale(x, w1, b1, w2, b2, *, block_b=None):
    """SE gate.

    x: (B, C); w1: (C, R); b1: (R,); w2: (R, C); b2: (C,)  ->  (B, C) gate in
    x.dtype.  Pass bf16 `x` to halve HBM traffic on this bandwidth-bound op.
    block_b: optional batch-tile override; by default derived from C and the
    device's VMEM capacity.
    """
    B, C = x.shape
    Cw, R = w1.shape
    assert Cw == C and w2.shape == (R, C) and b1.shape == (R,) and b2.shape == (C,)

    x_itemsize = jnp.dtype(x.dtype).itemsize

    # Heavy HBM streams (x, gate) stay in the caller's dtype.  Weights follow
    # x's dtype (their traffic is negligible; keeps the MXU feed narrow when
    # x is bf16 — native on v5e/v6e/v7x).  Biases stay f32: the bias add and
    # sigmoid run in f32 anyway.
    w1c = w1.astype(x.dtype)
    w2c = w2.astype(x.dtype)
    b1r = b1.reshape(1, R).astype(jnp.float32)
    b2r = b2.reshape(1, C).astype(jnp.float32)

    weight_bytes = ((w1c.size + w2c.size) * x_itemsize
                    + (b1r.size + b2r.size) * 4)

    vmem_cap = _vmem_capacity_bytes()
    if block_b is None:
        tb = _choose_batch_tile(B, C, x_itemsize, vmem_cap, weight_bytes)
    else:
        tb = max(1, min(block_b, B))
        if B >= 8:
            tb = max(8, (tb // 8) * 8)
    grid_b = pl.cdiv(B, tb)  # un-padded grid; partial tail block is masked

    # Scoped-VMEM limit sized to the chosen tile (v5e default is only 16 MiB,
    # v6e 32 MiB — raise it so large tiles actually fit), capped below the
    # physical capacity (64 MiB on v7x).
    stream_bytes = 2 * 2 * tb * C * x_itemsize          # x + gate, double-buffered
    vmem_needed = stream_bytes + 2 * weight_bytes + (2 << 20)
    vmem_limit = int(min(int(vmem_cap * 0.9), max(vmem_needed, 32 << 20)))

    cost = pl.CostEstimate(
        flops=4 * B * C * R,                 # two (B,C,R) matmuls
        transcendentals=B * C,               # one tanh per gate element
        bytes_accessed=2 * B * C * x_itemsize + weight_bytes,
    )

    out = pl.pallas_call(
        se_scale_kernel,
        out_shape=jax.ShapeDtypeStruct((B, C), x.dtype),
        grid=(grid_b,),
        in_specs=[
            # Streamed batch tiles of x (auto double-buffered pipeline).
            pl.BlockSpec((tb, C), lambda i: (i, 0)),
            # Weights/biases: full-array blocks with constant index maps ->
            # fetched once, VMEM-resident across all grid steps.
            # (pipeline_mode=pl.Buffered(1) would drop their dead second
            # buffer; only worth it for very large C against v7x's 64 MiB
            # VMEM, so left at the default here for portability.)
            pl.BlockSpec((C, R), lambda i: (0, 0)),
            pl.BlockSpec((1, R), lambda i: (0, 0)),
            pl.BlockSpec((R, C), lambda i: (0, 0)),
            pl.BlockSpec((1, C), lambda i: (0, 0)),
        ],
        out_specs=pl.BlockSpec((tb, C), lambda i: (i, 0)),
        compiler_params=pltpu.CompilerParams(
            # Independent batch tiles: shard grid steps across v7x's 2 cores.
            dimension_semantics=("parallel",),
            vmem_limit_bytes=vmem_limit,
        ),
        cost_estimate=cost,
    )(x, w1c, b1r, w2c, b2r)

    return out


def init_params(key, in_channels, reduction=16, dtype=jnp.float32):
    """torch.nn.Linear-style init (uniform +/- 1/sqrt(fan_in)); weights are
    stored pre-transposed as (in_features, out_features)."""
    k1, k2, k3, k4 = jax.random.split(key, 4)
    bound1 = 1.0 / (in_channels ** 0.5)
    bound2 = 1.0 / (reduction ** 0.5)
    w1 = jax.random.uniform(k1, (in_channels, reduction), dtype, -bound1, bound1)
    b1 = jax.random.uniform(k2, (reduction,), dtype, -bound1, bound1)
    w2 = jax.random.uniform(k3, (reduction, in_channels), dtype, -bound2, bound2)
    b2 = jax.random.uniform(k4, (in_channels,), dtype, -bound2, bound2)
    return w1, b1, w2, b2


def se_scale_ref(x, w1, b1, w2, b2):
    h = jnp.maximum(x @ w1 + b1, 0.0)
    return jax.nn.sigmoid(h @ w2 + b2)


if __name__ == "__main__":
    key = jax.random.PRNGKey(0)
    kx, kp = jax.random.split(key)

    B, C, R = 200, 128, 16  # batch, in_channels, reduction (= fc1 width)
    x = jax.random.normal(kx, (B, C), jnp.float32)
    w1, b1, w2, b2 = init_params(kp, C, R)
    ref = se_scale_ref(x, w1, b1, w2, b2)

    # 1) f32 path, auto-derived batch tile.
    out = jax.block_until_ready(se_scale(x, w1, b1, w2, b2))
    assert out.shape == (B, C) and out.dtype == x.dtype
    assert jnp.allclose(out, ref, atol=2e-3, rtol=2e-3)

    # 2) Multi-step grid with a masked partial tail block (no host-side
    #    pad / slice around the kernel).
    out_t = jax.block_until_ready(se_scale(x, w1, b1, w2, b2, block_b=64))
    assert jnp.allclose(out_t, ref, atol=2e-3, rtol=2e-3)

    # 3) Ragged batch (B=37) with the default tile selection.
    out_r = jax.block_until_ready(se_scale(x[:37], w1, b1, w2, b2))
    assert out_r.shape == (37, C)
    assert jnp.allclose(out_r, ref[:37], atol=2e-3, rtol=2e-3)

    # 4) bf16 at the HBM boundary: halves bytes moved on this mem-bound kernel.
    out_bf = jax.block_until_ready(se_scale(x.astype(jnp.bfloat16), w1, b1, w2, b2))
    assert out_bf.dtype == jnp.bfloat16
    assert jnp.allclose(out_bf.astype(jnp.float32), ref, atol=3e-2, rtol=3e-2)

    print("KERNEL_OK")
</pallas_src>

<mosaic_0001>
module attributes {stable_mosaic.version = 11 : i64} {
  func.func @se_scale_kernel(%arg0: i32, %arg1: memref<200x128xf32, #tpu.memory_space<vmem>>, %arg2: memref<128x16xf32, #tpu.memory_space<vmem>>, %arg3: memref<1x16xf32, #tpu.memory_space<vmem>>, %arg4: memref<16x128xf32, #tpu.memory_space<vmem>>, %arg5: memref<1x128xf32, #tpu.memory_space<vmem>>, %arg6: memref<200x128xf32, #tpu.memory_space<vmem>>) attributes {dimension_semantics = [#tpu.dimension_semantics<parallel>], iteration_bounds = array<i64: 1>, scalar_prefetch = 0 : i64, scratch_operands = 0 : i64, tpu.core_type = #tpu.core_type<tc>, window_params = [{transform_indices = @transform_0, window_bounds = array<i64: 200, 128>}, {pipeline_mode = #tpu.pipeline_mode<synchronous>, transform_indices = @transform_1, window_bounds = array<i64: 128, 16>}, {pipeline_mode = #tpu.pipeline_mode<synchronous>, transform_indices = @transform_2, window_bounds = array<i64: 1, 16>}, {pipeline_mode = #tpu.pipeline_mode<synchronous>, transform_indices = @transform_3, window_bounds = array<i64: 16, 128>}, {pipeline_mode = #tpu.pipeline_mode<synchronous>, transform_indices = @transform_4, window_bounds = array<i64: 1, 128>}, {transform_indices = @transform_5, window_bounds = array<i64: 200, 128>}]} {
    %c0 = arith.constant 0 : index
    %c0_0 = arith.constant 0 : index
    %0 = vector.load %arg1[%c0, %c0_0] : memref<200x128xf32, #tpu.memory_space<vmem>>, vector<200x128xf32>
    %c0_1 = arith.constant 0 : index
    %c0_2 = arith.constant 0 : index
    %1 = vector.load %arg2[%c0_1, %c0_2] : memref<128x16xf32, #tpu.memory_space<vmem>>, vector<128x16xf32>
    %cst = arith.constant dense<0.000000e+00> : vector<200x16xf32>
    %2 = tpu.matmul %0, %1, %cst {dimension_numbers = #tpu.dot_dimension_numbers<[1], [0], [0], [1], [0, 0, 1, 1], [], []>} : vector<200x128xf32>, vector<128x16xf32>, vector<200x16xf32> -> vector<200x16xf32>
    %c0_3 = arith.constant 0 : index
    %c0_4 = arith.constant 0 : index
    %3 = vector.load %arg3[%c0_3, %c0_4] : memref<1x16xf32, #tpu.memory_space<vmem>>, vector<1x16xf32>
    %4 = vector.broadcast %3 : vector<1x16xf32> to vector<200x16xf32>
    %5 = arith.addf %2, %4 : vector<200x16xf32>
    %cst_5 = arith.constant 0.000000e+00 : f32
    %6 = vector.broadcast %cst_5 : f32 to vector<200x16xf32>
    %7 = arith.maximumf %5, %6 : vector<200x16xf32>
    %c0_6 = arith.constant 0 : index
    %c0_7 = arith.constant 0 : index
    %8 = vector.load %arg4[%c0_6, %c0_7] : memref<16x128xf32, #tpu.memory_space<vmem>>, vector<16x128xf32>
    %cst_8 = arith.constant dense<0.000000e+00> : vector<200x128xf32>
    %9 = tpu.matmul %7, %8, %cst_8 {dimension_numbers = #tpu.dot_dimension_numbers<[1], [0], [0], [1], [0, 0, 1, 1], [], []>} : vector<200x16xf32>, vector<16x128xf32>, vector<200x128xf32> -> vector<200x128xf32>
    %c0_9 = arith.constant 0 : index
    %c0_10 = arith.constant 0 : index
    %10 = vector.load %arg5[%c0_9, %c0_10] : memref<1x128xf32, #tpu.memory_space<vmem>>, vector<1x128xf32>
    %11 = vector.broadcast %10 : vector<1x128xf32> to vector<200x128xf32>
    %12 = arith.addf %9, %11 : vector<200x128xf32>
    %cst_11 = arith.constant 5.000000e-01 : f32
    %13 = vector.broadcast %cst_11 : f32 to vector<200x128xf32>
    %14 = arith.mulf %13, %12 : vector<200x128xf32>
    %15 = math.tanh %14 : vector<200x128xf32>
    %cst_12 = arith.constant 5.000000e-01 : f32
    %16 = vector.broadcast %cst_12 : f32 to vector<200x128xf32>
    %17 = arith.mulf %16, %15 : vector<200x128xf32>
    %cst_13 = arith.constant 5.000000e-01 : f32
    %18 = vector.broadcast %cst_13 : f32 to vector<200x128xf32>
    %19 = arith.addf %17, %18 : vector<200x128xf32>
    %c0_14 = arith.constant 0 : index
    %c0_15 = arith.constant 0 : index
    %20 = vector.load %arg6[%c0_14, %c0_15] : memref<200x128xf32, #tpu.memory_space<vmem>>, vector<200x128xf32>
    tpu.vector_store %arg6[%c0_14, %c0_15], %19 {strides = array<i32>} : memref<200x128xf32, #tpu.memory_space<vmem>>, vector<200x128xf32>,
    return
  }
  func.func @transform_0(%arg0: i32) -> (i32, i32) {
    %c0_i32 = arith.constant 0 : i32
    %c0_i32_0 = arith.constant 0 : i32
    return %arg0, %c0_i32 : i32, i32
  }
  func.func @transform_1(%arg0: i32) -> (i32, i32) {
    %c0_i32 = arith.constant 0 : i32
    %c0_i32_0 = arith.constant 0 : i32
    %c0_i32_1 = arith.constant 0 : i32
    return %c0_i32, %c0_i32_0 : i32, i32
  }
  func.func @transform_2(%arg0: i32) -> (i32, i32) {
    %c0_i32 = arith.constant 0 : i32
    %c0_i32_0 = arith.constant 0 : i32
    %c0_i32_1 = arith.constant 0 : i32
    return %c0_i32, %c0_i32_0 : i32, i32
  }
  func.func @transform_3(%arg0: i32) -> (i32, i32) {
    %c0_i32 = arith.constant 0 : i32
    %c0_i32_0 = arith.constant 0 : i32
    %c0_i32_1 = arith.constant 0 : i32
    return %c0_i32, %c0_i32_0 : i32, i32
  }
  func.func @transform_4(%arg0: i32) -> (i32, i32) {
    %c0_i32 = arith.constant 0 : i32
    %c0_i32_0 = arith.constant 0 : i32
    %c0_i32_1 = arith.constant 0 : i32
    return %c0_i32, %c0_i32_0 : i32, i32
  }
  func.func @transform_5(%arg0: i32) -> (i32, i32) {
    %c0_i32 = arith.constant 0 : i32
    %c0_i32_0 = arith.constant 0 : i32
    return %arg0, %c0_i32 : i32, i32
  }
}

</mosaic_0001>

<llo_original>
// kernel: tpu_custom_call.1
$region0: #{tpu_custom_call.1}
  #allocation0 [shape = 'u32[]', space=smem, size = 0x4, offset = 0x4, fixed_abs, tag = 'smem constant byte address 0x4 - core index']
  #allocation1 [shape = 'u32[72,128]{1,0:T(1,128)}', space=vmem, size = 0x9000, scoped, tag = 'internal scratch']
  %s0 = inlined_call_operand.hbm [shape: f32[200,128], index: 0, kind: input, shape index: {}]
  %s1 = inlined_call_operand.vmem [shape: f32[128,16], index: 1, kind: input, shape index: {}]
  %s2 = inlined_call_operand.vmem [shape: f32[1,16], index: 2, kind: input, shape index: {}]
  %s3 = inlined_call_operand.vmem [shape: f32[16,128], index: 3, kind: input, shape index: {}]
  %s4 = inlined_call_operand.vmem [shape: f32[1,128], index: 4, kind: input, shape index: {}]
  %s5 = inlined_call_operand.hbm [shape: f32[200,128], index: 5, kind: output, shape index: {}]
  %s6 = sld [smem:[#allocation0]]
  $region34: #{tpu_custom_call.1} parent=0
    _
  %s8 = ssub.s32 1, %s6
  %s9 = scalar_select 0, %s8, %s6
  $region1: #{tpu_custom_call.1} parent=0
    #allocation2 [shape = 'u8[102400]{0}', space=vmem, size = 0x19000, scoped, tag = 'input window, operand 0, single buffered']
    #allocation3 [shape = 's32[1]{0}', space=sflag, size = 0x4, scoped, tag = 'scoped memory for tpu_custom_call.1']
    #allocation4 [shape = 's32[1]{0}', space=sflag, size = 0x4, scoped, tag = 'scoped memory for tpu_custom_call.1']
    #allocation5 [shape = 'u8[102400]{0}', space=vmem, size = 0x19000, scoped, tag = 'output window, operand 0, single buffered']
    %10 = vsyncpa [#allocation3], 0
    %11 = vsyncpa [#allocation4], 0
    // Predicated region
    $region2: #{tpu_custom_call.1} parent=1 // pred_check
      _
    $region3: #{tpu_custom_call.1} parent=1 // pred_check_branch
      %13 = sbr.rel (0) target = $region5
    $region4: #{tpu_custom_call.1} parent=1 // pred_region
      %15 = vsyncadd [#allocation3], 0
      %s16 = sshll.u32 %s0, 4
      %s17 = int_to_ptr.hbm [resolvable:$true] %s16
      %s18 = sshll.u32 [#allocation2], 4
      %s19 = int_to_ptr.vmem [resolvable:$true] %s18
      %24 = dma.hbm_to_vmem [thread:$0]  %s17, 3200, %s19, [#allocation3], 128, 128, 8
    $region5: #{tpu_custom_call.1} parent=1 // pred_fallthru
      _
    // Predicated region
    $region6: #{tpu_custom_call.1} parent=1 // pred_check
      _
    $region7: #{tpu_custom_call.1} parent=1 // pred_check_branch
      %26 = sbr.rel (0) target = $region9
    $region8: #{tpu_custom_call.1} parent=1 // pred_region
      _
    $region9: #{tpu_custom_call.1} parent=1 // pred_fallthru
      _
    // Predicated region
    $region10: #{tpu_custom_call.1} parent=1 // pred_check
      _
    $region11: #{tpu_custom_call.1} parent=1 // pred_check_branch
      %28 = sbr.rel (0) target = $region13
    $region12: #{tpu_custom_call.1} parent=1 // pred_region
      _
    $region13: #{tpu_custom_call.1} parent=1 // pred_fallthru
      _
    // Predicated region
    $region14: #{tpu_custom_call.1} parent=1 // pred_check
      _
    $region15: #{tpu_custom_call.1} parent=1 // pred_check_branch
      %30 = sbr.rel (0) target = $region17
    $region16: #{tpu_custom_call.1} parent=1 // pred_region
      _
    $region17: #{tpu_custom_call.1} parent=1 // pred_fallthru
      _
    // Predicated region
    $region18: #{tpu_custom_call.1} parent=1 // pred_check
      _
    $region19: #{tpu_custom_call.1} parent=1 // pred_check_branch
      %32 = sbr.rel (0) target = $region21
    $region20: #{tpu_custom_call.1} parent=1 // pred_region
      _
    $region21: #{tpu_custom_call.1} parent=1 // pred_fallthru
      _
    // Predicated region
    $region22: #{tpu_custom_call.1} parent=1 // pred_check
      _
    $region23: #{tpu_custom_call.1} parent=1 // pred_check_branch
      %34 = sbr.rel (0) target = $region25
    $region24: #{tpu_custom_call.1} parent=1 // pred_region
      %36 = dma.done [#allocation3], 3200
    $region25: #{tpu_custom_call.1} parent=1 // pred_fallthru
      _
    %v37 = vld [vmem:[#allocation2] sm:$0xff]
    %v38 = vld [vmem:[#allocation2 + $0x8] sm:$0xff]
    %v39 = vld [vmem:[#allocation2 + $0x10] sm:$0xff]
    %v40 = vld [vmem:[#allocation2 + $0x18] sm:$0xff]
    %v41 = vld [vmem:[#allocation2 + $0x20] sm:$0xff]
    %v42 = vld [vmem:[#allocation2 + $0x28] sm:$0xff]
    %v43 = vld [vmem:[#allocation2 + $0x30] sm:$0xff]
    %v44 = vld [vmem:[#allocation2 + $0x38] sm:$0xff]
    %v45 = vld [vmem:[#allocation2 + $0x40] sm:$0xff]
    %v46 = vld [vmem:[#allocation2 + $0x48] sm:$0xff]
    %v47 = vld [vmem:[#allocation2 + $0x50] sm:$0xff]
    %v48 = vld [vmem:[#allocation2 + $0x58] sm:$0xff]
    %v49 = vld [vmem:[#allocation2 + $0x60] sm:$0xff]
    %v50 = vld [vmem:[#allocation2 + $0x68] sm:$0xff]
    %v51 = vld [vmem:[#allocation2 + $0x70] sm:$0xff]
    %v52 = vld [vmem:[#allocation2 + $0x78] sm:$0xff]
    %v53 = vld [vmem:[#allocation2 + $0x80] sm:$0xff]
    %v54 = vld [vmem:[#allocation2 + $0x88] sm:$0xff]
    %v55 = vld [vmem:[#allocation2 + $0x90] sm:$0xff]
    %v56 = vld [vmem:[#allocation2 + $0x98] sm:$0xff]
    %v57 = vld [vmem:[#allocation2 + $0xa0] sm:$0xff]
    %v58 = vld [vmem:[#allocation2 + $0xa8] sm:$0xff]
    %v59 = vld [vmem:[#allocation2 + $0xb0] sm:$0xff]
    %v60 = vld [vmem:[#allocation2 + $0xb8] sm:$0xff]
    %v61 = vld [vmem:[#allocation2 + $0xc0] sm:$0xff]
    %v62 = vld [vmem:[%s1] sm:$0xff]
    %v63 = vld [vmem:[%s1 + $0x8] sm:$0xff]
    %v64 = vld [vmem:[%s1 + $0x10] sm:$0xff]
    %v65 = vld [vmem:[%s1 + $0x18] sm:$0xff]
    %v66 = vld [vmem:[%s1 + $0x20] sm:$0xff]
    %v67 = vld [vmem:[%s1 + $0x28] sm:$0xff]
    %v68 = vld [vmem:[%s1 + $0x30] sm:$0xff]
    %v69 = vld [vmem:[%s1 + $0x38] sm:$0xff]
    %v70 = vld [vmem:[%s1 + $0x40] sm:$0xff]
    %v71 = vld [vmem:[%s1 + $0x48] sm:$0xff]
    %v72 = vld [vmem:[%s1 + $0x50] sm:$0xff]
    %v73 = vld [vmem:[%s1 + $0x58] sm:$0xff]
    %v74 = vld [vmem:[%s1 + $0x60] sm:$0xff]
    %v75 = vld [vmem:[%s1 + $0x68] sm:$0xff]
    %v76 = vld [vmem:[%s1 + $0x70] sm:$0xff]
    %v77 = vld [vmem:[%s1 + $0x78] sm:$0xff]
    %v78 = vld [vmem:[%s2] sm:$0x1]
    %v80 = vperm.slane %v78, 0
    %82 = vmatpush.msra.mxu0 %v77
    %83 = vmatpush.msra.mxu0 %v76
    %84 = vmatpush.msra.mxu0 %v75
    %85 = vmatpush.msra.mxu0 %v74
    %86 = vmatpush.msra.mxu0 %v73
    %87 = vmatpush.msra.mxu0 %v72
    %88 = vmatpush.msra.mxu0 %v71
    %89 = vmatpush.msra.mxu0 %v70
    %90 = vmatpush.msra.mxu0 %v69
    %91 = vmatpush.msra.mxu0 %v68
    %92 = vmatpush.msra.mxu0 %v67
    %93 = vmatpush.msra.mxu0 %v66
    %94 = vmatpush.msra.mxu0 %v65
    %95 = vmatpush.msra.mxu0 %v64
    %96 = vmatpush.msra.mxu0 %v63
    %97 = vmatpush.msra.mxu0 %v62
    %98 = vmatmul.f32.gmra.mxu0 %v37
    %v99 = vpop.f32.mrf.mxu0
    %v100 = vadd.f32 %v80, %v99
    %101 = vmatmul.f32.gmra.mxu0 %v38
    %v102 = vpop.f32.mrf.mxu0
    %v103 = vadd.f32 %v80, %v102
    %104 = vmatmul.f32.gmra.mxu0 %v39
    %v105 = vpop.f32.mrf.mxu0
    %v106 = vadd.f32 %v80, %v105
    %107 = vmatmul.f32.gmra.mxu0 %v40
    %v108 = vpop.f32.mrf.mxu0
    %v109 = vadd.f32 %v80, %v108
    %110 = vmatmul.f32.gmra.mxu0 %v41
    %v111 = vpop.f32.mrf.mxu0
    %v112 = vadd.f32 %v80, %v111
    %113 = vmatmul.f32.gmra.mxu0 %v42
    %v114 = vpop.f32.mrf.mxu0
    %v115 = vadd.f32 %v80, %v114
    %116 = vmatmul.f32.gmra.mxu0 %v43
    %v117 = vpop.f32.mrf.mxu0
    %v118 = vadd.f32 %v80, %v117
    %119 = vmatmul.f32.gmra.mxu0 %v44
    %v120 = vpop.f32.mrf.mxu0
    %v121 = vadd.f32 %v80, %v120
    %122 = vmatmul.f32.gmra.mxu0 %v45
    %v123 = vpop.f32.mrf.mxu0
    %v124 = vadd.f32 %v80, %v123
    %125 = vmatmul.f32.gmra.mxu0 %v46
    %v126 = vpop.f32.mrf.mxu0
    %v127 = vadd.f32 %v80, %v126
    %128 = vmatmul.f32.gmra.mxu0 %v47
    %v129 = vpop.f32.mrf.mxu0
    %v130 = vadd.f32 %v80, %v129
    %131 = vmatmul.f32.gmra.mxu0 %v48
    %v132 = vpop.f32.mrf.mxu0
    %v133 = vadd.f32 %v80, %v132
    %134 = vmatmul.f32.gmra.mxu0 %v49
    %v135 = vpop.f32.mrf.mxu0
    %v136 = vadd.f32 %v80, %v135
    %137 = vmatmul.f32.gmra.mxu0 %v50
    %v138 = vpop.f32.mrf.mxu0
    %v139 = vadd.f32 %v80, %v138
    %140 = vmatmul.f32.gmra.mxu0 %v51
    %v141 = vpop.f32.mrf.mxu0
    %v142 = vadd.f32 %v80, %v141
    %143 = vmatmul.f32.gmra.mxu0 %v52
    %v144 = vpop.f32.mrf.mxu0
    %v145 = vadd.f32 %v80, %v144
    %146 = vmatmul.f32.gmra.mxu0 %v53
    %v147 = vpop.f32.mrf.mxu0
    %v148 = vadd.f32 %v80, %v147
    %149 = vmatmul.f32.gmra.mxu0 %v54
    %v150 = vpop.f32.mrf.mxu0
    %v151 = vadd.f32 %v80, %v150
    %152 = vmatmul.f32.gmra.mxu0 %v55
    %v153 = vpop.f32.mrf.mxu0
    %v154 = vadd.f32 %v80, %v153
    %155 = vmatmul.f32.gmra.mxu0 %v56
    %v156 = vpop.f32.mrf.mxu0
    %v157 = vadd.f32 %v80, %v156
    %158 = vmatmul.f32.gmra.mxu0 %v57
    %v159 = vpop.f32.mrf.mxu0
    %v160 = vadd.f32 %v80, %v159
    %161 = vmatmul.f32.gmra.mxu0 %v58
    %v162 = vpop.f32.mrf.mxu0
    %v163 = vadd.f32 %v80, %v162
    %164 = vmatmul.f32.gmra.mxu0 %v59
    %v165 = vpop.f32.mrf.mxu0
    %v166 = vadd.f32 %v80, %v165
    %167 = vmatmul.f32.gmra.mxu0 %v60
    %v168 = vpop.f32.mrf.mxu0
    %v169 = vadd.f32 %v80, %v168
    %170 = vmatmul.f32.gmra.mxu0 %v61
    %v171 = vpop.f32.mrf.mxu0
    %v172 = vadd.f32 %v80, %v171
    %173 = vdwg.mxu0
    %v174 = vmax.f32 %v100, 0.0
    %v175 = vmax.f32 %v103, 0.0
    %v176 = vmax.f32 %v106, 0.0
    %v177 = vmax.f32 %v109, 0.0
    %v178 = vmax.f32 %v112, 0.0
    %v179 = vmax.f32 %v115, 0.0
    %v180 = vmax.f32 %v118, 0.0
    %v181 = vmax.f32 %v121, 0.0
    %v182 = vmax.f32 %v124, 0.0
    %v183 = vmax.f32 %v127, 0.0
    %v184 = vmax.f32 %v130, 0.0
    %v185 = vmax.f32 %v133, 0.0
    %v186 = vmax.f32 %v136, 0.0
    %v187 = vmax.f32 %v139, 0.0
    %v188 = vmax.f32 %v142, 0.0
    %v189 = vmax.f32 %v145, 0.0
    %v190 = vmax.f32 %v148, 0.0
    %v191 = vmax.f32 %v151, 0.0
    %v192 = vmax.f32 %v154, 0.0
    %v193 = vmax.f32 %v157, 0.0
    %v194 = vmax.f32 %v160, 0.0
    %v195 = vmax.f32 %v163, 0.0
    %v196 = vmax.f32 %v166, 0.0
    %v197 = vmax.f32 %v169, 0.0
    %v198 = vmax.f32 %v172, 0.0
    %v199 = vld [vmem:[%s3] sm:$0xff]
    %v200 = vld [vmem:[%s3 + $0x8] sm:$0xff]
    %v201 = vld [vmem:[%s4] sm:$0x1]
    %v203 = vperm.slane %v201, 0
    %vm205 = vcmask 130048
    %v207 = vsel %vm205, %v174, 0
    %v210 = vsel %vm205, %v175, 0
    %v213 = vsel %vm205, %v176, 0
    %v216 = vsel %vm205, %v177, 0
    %v219 = vsel %vm205, %v178, 0
    %v222 = vsel %vm205, %v179, 0
    %v225 = vsel %vm205, %v180, 0
    %v228 = vsel %vm205, %v181, 0
    %v231 = vsel %vm205, %v182, 0
    %v234 = vsel %vm205, %v183, 0
    %v237 = vsel %vm205, %v184, 0
    %v240 = vsel %vm205, %v185, 0
    %v243 = vsel %vm205, %v186, 0
    %v246 = vsel %vm205, %v187, 0
    %v249 = vsel %vm205, %v188, 0
    %v252 = vsel %vm205, %v189, 0
    %v255 = vsel %vm205, %v190, 0
    %v258 = vsel %vm205, %v191, 0
    %v261 = vsel %vm205, %v192, 0
    %v264 = vsel %vm205, %v193, 0
    %v267 = vsel %vm205, %v194, 0
    %v270 = vsel %vm205, %v195, 0
    %v273 = vsel %vm205, %v196, 0
    %v276 = vsel %vm205, %v197, 0
    %v279 = vsel %vm205, %v198, 0
    %281 = vmatpush.msra.mxu0 0.0
    %282 = vmatpush.msra.mxu0 0.0
    %283 = vmatpush.msra.mxu0 0.0
    %284 = vmatpush.msra.mxu0 0.0
    %285 = vmatpush.msra.mxu0 0.0
    %286 = vmatpush.msra.mxu0 0.0
    %287 = vmatpush.msra.mxu0 0.0
    %288 = vmatpush.msra.mxu0 0.0
    %289 = vmatpush.msra.mxu0 0.0
    %290 = vmatpush.msra.mxu0 0.0
    %291 = vmatpush.msra.mxu0 0.0
    %292 = vmatpush.msra.mxu0 0.0
    %293 = vmatpush.msra.mxu0 0.0
    %294 = vmatpush.msra.mxu0 0.0
    %295 = vmatpush.msra.mxu0 %v200
    %296 = vmatpush.msra.mxu0 %v199
    %297 = vmatmul.f32.gmra.mxu0 %v207
    %v298 = vpop.f32.mrf.mxu0
    %v299 = vadd.f32 %v203, %v298
    %300 = vmatmul.f32.gmra.mxu0 %v210
    %v301 = vpop.f32.mrf.mxu0
    %v302 = vadd.f32 %v203, %v301
    %303 = vmatmul.f32.gmra.mxu0 %v213
    %v304 = vpop.f32.mrf.mxu0
    %v305 = vadd.f32 %v203, %v304
    %306 = vmatmul.f32.gmra.mxu0 %v216
    %v307 = vpop.f32.mrf.mxu0
    %v308 = vadd.f32 %v203, %v307
    %309 = vmatmul.f32.gmra.mxu0 %v219
    %v310 = vpop.f32.mrf.mxu0
    %v311 = vadd.f32 %v203, %v310
    %312 = vmatmul.f32.gmra.mxu0 %v222
    %v313 = vpop.f32.mrf.mxu0
    %v314 = vadd.f32 %v203, %v313
    %315 = vmatmul.f32.gmra.mxu0 %v225
    %v316 = vpop.f32.mrf.mxu0
    %v317 = vadd.f32 %v203, %v316
    %318 = vmatmul.f32.gmra.mxu0 %v228
    %v319 = vpop.f32.mrf.mxu0
    %v320 = vadd.f32 %v203, %v319
    %321 = vmatmul.f32.gmra.mxu0 %v231
    %v322 = vpop.f32.mrf.mxu0
    %v323 = vadd.f32 %v203, %v322
    %324 = vmatmul.f32.gmra.mxu0 %v234
    %v325 = vpop.f32.mrf.mxu0
    %v326 = vadd.f32 %v203, %v325
    %327 = vmatmul.f32.gmra.mxu0 %v237
    %v328 = vpop.f32.mrf.mxu0
    %v329 = vadd.f32 %v203, %v328
    %330 = vmatmul.f32.gmra.mxu0 %v240
    %v331 = vpop.f32.mrf.mxu0
    %v332 = vadd.f32 %v203, %v331
    %333 = vmatmul.f32.gmra.mxu0 %v243
    %v334 = vpop.f32.mrf.mxu0
    %v335 = vadd.f32 %v203, %v334
    %336 = vmatmul.f32.gmra.mxu0 %v246
    %v337 = vpop.f32.mrf.mxu0
    %v338 = vadd.f32 %v203, %v337
    %339 = vmatmul.f32.gmra.mxu0 %v249
    %v340 = vpop.f32.mrf.mxu0
    %v341 = vadd.f32 %v203, %v340
    %342 = vmatmul.f32.gmra.mxu0 %v252
    %v343 = vpop.f32.mrf.mxu0
    %v344 = vadd.f32 %v203, %v343
    %345 = vmatmul.f32.gmra.mxu0 %v255
    %v346 = vpop.f32.mrf.mxu0
    %v347 = vadd.f32 %v203, %v346
    %348 = vmatmul.f32.gmra.mxu0 %v258
    %v349 = vpop.f32.mrf.mxu0
    %v350 = vadd.f32 %v203, %v349
    %351 = vmatmul.f32.gmra.mxu0 %v261
    %v352 = vpop.f32.mrf.mxu0
    %v353 = vadd.f32 %v203, %v352
    %354 = vmatmul.f32.gmra.mxu0 %v264
    %v355 = vpop.f32.mrf.mxu0
    %v356 = vadd.f32 %v203, %v355
    %357 = vmatmul.f32.gmra.mxu0 %v267
    %v358 = vpop.f32.mrf.mxu0
    %v359 = vadd.f32 %v203, %v358
    %360 = vmatmul.f32.gmra.mxu0 %v270
    %v361 = vpop.f32.mrf.mxu0
    %v362 = vadd.f32 %v203, %v361
    %363 = vmatmul.f32.gmra.mxu0 %v273
    %v364 = vpop.f32.mrf.mxu0
    %v365 = vadd.f32 %v203, %v364
    %366 = vmatmul.f32.gmra.mxu0 %v276
    %v367 = vpop.f32.mrf.mxu0
    %v368 = vadd.f32 %v203, %v367
    %369 = vmatmul.f32.gmra.mxu0 %v279
    %v370 = vpop.f32.mrf.mxu0
    %v371 = vadd.f32 %v203, %v370
    %372 = vdwg.mxu0
    %v373 = vmul.f32 %v299, 0.5
    %v374 = vmul.f32 %v302, 0.5
    %v375 = vmul.f32 %v305, 0.5
    %v376 = vmul.f32 %v308, 0.5
    %v377 = vmul.f32 %v311, 0.5
    %v378 = vmul.f32 %v314, 0.5
    %v379 = vmul.f32 %v317, 0.5
    %v380 = vmul.f32 %v320, 0.5
    %v381 = vmul.f32 %v323, 0.5
    %v382 = vmul.f32 %v326, 0.5
    %v383 = vmul.f32 %v329, 0.5
    %v384 = vmul.f32 %v332, 0.5
    %v385 = vmul.f32 %v335, 0.5
    %v386 = vmul.f32 %v338, 0.5
    %v387 = vmul.f32 %v341, 0.5
    %v388 = vmul.f32 %v344, 0.5
    %v389 = vmul.f32 %v347, 0.5
    %v390 = vmul.f32 %v350, 0.5
    %v391 = vmul.f32 %v353, 0.5
    %v392 = vmul.f32 %v356, 0.5
    %v393 = vmul.f32 %v359, 0.5
    %v394 = vmul.f32 %v362, 0.5
    %v395 = vmul.f32 %v365, 0.5
    %v396 = vmul.f32 %v368, 0.5
    %v397 = vmul.f32 %v371, 0.5
    %v398 = vtanh.pop %v373
    %v399 = vtanh.pop %v374
    %v400 = vtanh.pop %v375
    %v401 = vtanh.pop %v376
    %v402 = vtanh.pop %v377
    %v403 = vtanh.pop %v378
    %v404 = vtanh.pop %v379
    %v405 = vtanh.pop %v380
    %v406 = vtanh.pop %v381
    %v407 = vtanh.pop %v382
    %v408 = vtanh.pop %v383
    %v409 = vtanh.pop %v384
    %v410 = vtanh.pop %v385
    %v411 = vtanh.pop %v386
    %v412 = vtanh.pop %v387
    %v413 = vtanh.pop %v388
    %v414 = vtanh.pop %v389
    %v415 = vtanh.pop %v390
    %v416 = vtanh.pop %v391
    %v417 = vtanh.pop %v392
    %v418 = vtanh.pop %v393
    %v419 = vtanh.pop %v394
    %v420 = vtanh.pop %v395
    %v421 = vtanh.pop %v396
    %v422 = vtanh.pop %v397
    %v423 = vmul.f32 %v398, 0.5
    %v424 = vmul.f32 %v399, 0.5
    %v425 = vmul.f32 %v400, 0.5
    %v426 = vmul.f32 %v401, 0.5
    %v427 = vmul.f32 %v402, 0.5
    %v428 = vmul.f32 %v403, 0.5
    %v429 = vmul.f32 %v404, 0.5
    %v430 = vmul.f32 %v405, 0.5
    %v431 = vmul.f32 %v406, 0.5
    %v432 = vmul.f32 %v407, 0.5
    %v433 = vmul.f32 %v408, 0.5
    %v434 = vmul.f32 %v409, 0.5
    %v435 = vmul.f32 %v410, 0.5
    %v436 = vmul.f32 %v411, 0.5
    %v437 = vmul.f32 %v412, 0.5
    %v438 = vmul.f32 %v413, 0.5
    %v439 = vmul.f32 %v414, 0.5
    %v440 = vmul.f32 %v415, 0.5
    %v441 = vmul.f32 %v416, 0.5
    %v442 = vmul.f32 %v417, 0.5
    %v443 = vmul.f32 %v418, 0.5
    %v444 = vmul.f32 %v419, 0.5
    %v445 = vmul.f32 %v420, 0.5
    %v446 = vmul.f32 %v421, 0.5
    %v447 = vmul.f32 %v422, 0.5
    %v448 = vadd.f32 %v423, 0.5
    %v449 = vadd.f32 %v424, 0.5
    %v450 = vadd.f32 %v425, 0.5
    %v451 = vadd.f32 %v426, 0.5
    %v452 = vadd.f32 %v427, 0.5
    %v453 = vadd.f32 %v428, 0.5
    %v454 = vadd.f32 %v429, 0.5
    %v455 = vadd.f32 %v430, 0.5
    %v456 = vadd.f32 %v431, 0.5
    %v457 = vadd.f32 %v432, 0.5
    %v458 = vadd.f32 %v433, 0.5
    %v459 = vadd.f32 %v434, 0.5
    %v460 = vadd.f32 %v435, 0.5
    %v461 = vadd.f32 %v436, 0.5
    %v462 = vadd.f32 %v437, 0.5
    %v463 = vadd.f32 %v438, 0.5
    %v464 = vadd.f32 %v439, 0.5
    %v465 = vadd.f32 %v440, 0.5
    %v466 = vadd.f32 %v441, 0.5
    %v467 = vadd.f32 %v442, 0.5
    %v468 = vadd.f32 %v443, 0.5
    %v469 = vadd.f32 %v444, 0.5
    %v470 = vadd.f32 %v445, 0.5
    %v471 = vadd.f32 %v446, 0.5
    %v472 = vadd.f32 %v447, 0.5
    %473 = vst [vmem:[#allocation5] sm:$0xff] %v448
    %474 = vst [vmem:[#allocation5 + $0x8] sm:$0xff] %v449
    %475 = vst [vmem:[#allocation5 + $0x10] sm:$0xff] %v450
    %476 = vst [vmem:[#allocation5 + $0x18] sm:$0xff] %v451
    %477 = vst [vmem:[#allocation5 + $0x20] sm:$0xff] %v452
    %478 = vst [vmem:[#allocation5 + $0x28] sm:$0xff] %v453
    %479 = vst [vmem:[#allocation5 + $0x30] sm:$0xff] %v454
    %480 = vst [vmem:[#allocation5 + $0x38] sm:$0xff] %v455
    %481 = vst [vmem:[#allocation5 + $0x40] sm:$0xff] %v456
    %482 = vst [vmem:[#allocation5 + $0x48] sm:$0xff] %v457
    %483 = vst [vmem:[#allocation5 + $0x50] sm:$0xff] %v458
    %484 = vst [vmem:[#allocation5 + $0x58] sm:$0xff] %v459
    %485 = vst [vmem:[#allocation5 + $0x60] sm:$0xff] %v460
    %486 = vst [vmem:[#allocation5 + $0x68] sm:$0xff] %v461
    %487 = vst [vmem:[#allocation5 + $0x70] sm:$0xff] %v462
    %488 = vst [vmem:[#allocation5 + $0x78] sm:$0xff] %v463
    %489 = vst [vmem:[#allocation5 + $0x80] sm:$0xff] %v464
    %490 = vst [vmem:[#allocation5 + $0x88] sm:$0xff] %v465
    %491 = vst [vmem:[#allocation5 + $0x90] sm:$0xff] %v466
    %492 = vst [vmem:[#allocation5 + $0x98] sm:$0xff] %v467
    %493 = vst [vmem:[#allocation5 + $0xa0] sm:$0xff] %v468
    %494 = vst [vmem:[#allocation5 + $0xa8] sm:$0xff] %v469
    %495 = vst [vmem:[#allocation5 + $0xb0] sm:$0xff] %v470
    %496 = vst [vmem:[#allocation5 + $0xb8] sm:$0xff] %v471
    %497 = vst [vmem:[#allocation5 + $0xc0] sm:$0xff] %v472
    // Predicated region
    $region26: #{tpu_custom_call.1} parent=1 // pred_check
      _
    $region27: #{tpu_custom_call.1} parent=1 // pred_check_branch
      %499 = sbr.rel (0) target = $region29
    $region28: #{tpu_custom_call.1} parent=1 // pred_region
      %501 = vsyncadd [#allocation4], 0
      %s502 = sshll.u32 [#allocation5], 4
      %s503 = int_to_ptr.vmem [resolvable:$true] %s502
      %s504 = sshll.u32 %s5, 4
      %s505 = int_to_ptr.hbm [resolvable:$true] %s504
      %510 = dma.vmem_to_hbm [thread:$0]  %s503, 3200, %s505, [#allocation4], 128, 128, 8
    $region29: #{tpu_custom_call.1} parent=1 // pred_fallthru
      _
    // Predicated region
    $region30: #{tpu_custom_call.1} parent=1 // pred_check
      _
    $region31: #{tpu_custom_call.1} parent=1 // pred_check_branch
      %512 = sbr.rel (0) target = $region33
    $region32: #{tpu_custom_call.1} parent=1 // pred_region
      %514 = dma.done [#allocation4], 3200
    $region33: #{tpu_custom_call.1} parent=1 // pred_fallthru
      _
    %515 = vsyncpa [#allocation3], 1
    %516 = vsyncpa [#allocation4], 1

</llo_original>
